<compile_context>
chip_gen: v5e
topology: v5e:2x2
jax: 0.10.0
libtpu: 0.0.40
codegen_flags: <defaults>
</compile_context>

<pallas_src>
import functools

import jax
import jax.numpy as jnp
from jax import lax
from jax.experimental import pallas as pl
from jax.experimental.pallas import tpu as pltpu

_LANE = 128
_SUBLANE = 8


def _round_up(v, m):
    return ((v + m - 1) // m) * m


# ---------------------------------------------------------------------------
# Kernels
# ---------------------------------------------------------------------------
def _resident_single_kernel(x_ref, w_ref, b_ref, o_ref, *, compute_dtype):
    # x_ref : (tm, K)     native dtype (cast happens here, not in the wrapper)
    # w_ref : (N_pad, K)  native dtype, fully VMEM-resident (constant index map)
    # b_ref : (1, N_pad)  f32
    # o_ref : (tm, N_pad) lane-dense output
    acc = lax.dot_general(
        x_ref[...].astype(compute_dtype),
        w_ref[...].astype(compute_dtype),
        dimension_numbers=(((1,), (1,)), ((), ())),   # x @ W.T, no transpose
        preferred_element_type=jnp.float32,
    )
    o_ref[...] = (acc + b_ref[...]).astype(o_ref.dtype)


def _resident_multi_kernel(x_ref, w_ref, b_ref, o_ref, acc_ref, *,
                           tk, compute_dtype):
    # W stays resident across the whole grid; only the x tile streams per step.
    k = pl.program_id(1)

    @pl.when(k == 0)
    def _():
        acc_ref[...] = jnp.zeros_like(acc_ref)

    k_off = pl.multiple_of(k * tk, _LANE)
    acc_ref[...] += lax.dot_general(
        x_ref[...].astype(compute_dtype),
        w_ref[:, pl.ds(k_off, tk)].astype(compute_dtype),
        dimension_numbers=(((1,), (1,)), ((), ())),
        preferred_element_type=jnp.float32,
    )

    @pl.when(k == pl.num_programs(1) - 1)
    def _():
        o_ref[...] = (acc_ref[...] + b_ref[...]).astype(o_ref.dtype)


def _streamed_kernel(x_ref, w_ref, b_ref, o_ref, acc_ref, *, compute_dtype):
    # Large-W fallback: W streamed in (tn, tk) tiles, output tiled in N.
    k = pl.program_id(2)

    @pl.when(k == 0)
    def _():
        acc_ref[...] = jnp.zeros_like(acc_ref)

    acc_ref[...] += lax.dot_general(
        x_ref[...].astype(compute_dtype),
        w_ref[...].astype(compute_dtype),
        dimension_numbers=(((1,), (1,)), ((), ())),
        preferred_element_type=jnp.float32,
    )

    @pl.when(k == pl.num_programs(2) - 1)
    def _():
        o_ref[...] = (acc_ref[...] + b_ref[...]).astype(o_ref.dtype)


# ---------------------------------------------------------------------------
# Tile / VMEM planning
# ---------------------------------------------------------------------------
def _vmem_limits():
    """Generation-aware VMEM sizing (v5e/v6e: 128 MiB, v7x: 64 MiB per TC)."""
    cap = 128 * 1024 * 1024
    try:
        info = pltpu.get_tpu_info()
        cap = int(getattr(info, "vmem_capacity_bytes", cap)) or cap
    except Exception:
        pass
    limit = min(int(cap * 0.85), cap - 8 * 1024 * 1024)   # scoped VMEM limit
    budget = int(limit * 0.80)                             # tile-chooser budget
    return budget, limit


def _initial_tm(M, block_m):
    if M <= block_m and M < 16:
        return M                       # single full-extent tile
    tm = min(block_m, M)
    if tm < M:
        tm = max(_SUBLANE, (tm // _SUBLANE) * _SUBLANE)
    if M >= 16:
        # Guarantee >=2 M tiles so the "parallel" batch axis can shard across
        # both TensorCores on v7x (negligible cost on v5e/v6e).
        cap = _round_up((M + 1) // 2, _SUBLANE)
        tm = min(tm, cap)
    return tm


def _make_plan(M, K, N_pad, x_bytes, w_bytes, out_bytes, block_m, budget):
    bias_bytes = 2 * N_pad * 4
    tm = _initial_tm(M, block_m)

    def pick_tk():
        if K % _LANE == 0 and K > 2048:
            for t in (2048, 1024, 512, 256, 128):
                if K % t == 0:
                    return t
        return K

    # ---- W-resident plan: fetch W once, keep it in VMEM for the whole grid.
    w_resident = 2 * N_pad * K * w_bytes        # conservative (double buffer)
    if w_resident + bias_bytes <= budget // 2:
        tk = pick_tk()
        k_steps = 1 if tk == K else K // tk

        def usage(tm_):
            u = w_resident + bias_bytes
            u += 2 * tm_ * tk * x_bytes          # double-buffered x tile
            u += 2 * tm_ * N_pad * out_bytes     # double-buffered out tile
            if k_steps > 1:
                u += tm_ * N_pad * 4             # f32 accumulator scratch
            return u

        while tm > _SUBLANE and usage(tm) > budget:
            tm = max(_SUBLANE, ((tm // 2) // _SUBLANE) * _SUBLANE)
        return dict(variant="resident", tm=tm, tk=tk, k_steps=k_steps)

    # ---- Large-W fallback: stream W tiles, tile the output dimension too.
    tn = next(t for t in (512, 256, 128) if N_pad % t == 0)
    tk = pick_tk()
    k_steps = 1 if tk == K else K // tk

    def usage(tm_, tn_, tk_):
        return (2 * tm_ * tk_ * x_bytes + 2 * tn_ * tk_ * w_bytes
                + 2 * tm_ * tn_ * out_bytes + tm_ * tn_ * 4 + 2 * tn_ * 4)

    while usage(tm, tn, tk) > budget:
        if tm > 256:
            tm = ((tm // 2) // _SUBLANE) * _SUBLANE
        elif tk > _LANE and K % (tk // 2) == 0 and (tk // 2) % _LANE == 0:
            tk //= 2
            k_steps = K // tk
        elif tn > _LANE:
            tn //= 2
        elif tm > _SUBLANE:
            tm = max(_SUBLANE, ((tm // 2) // _SUBLANE) * _SUBLANE)
        else:
            break
    return dict(variant="streamed", tm=tm, tn=tn, tk=tk,
                k_steps=k_steps, n_steps=N_pad // tn)


# ---------------------------------------------------------------------------
# Wrapper
# ---------------------------------------------------------------------------
@functools.partial(jax.jit, static_argnames=("block_m", "compute_dtype"))
def logistic_regression_forward(x, w, b, *, block_m=1024, compute_dtype=None):
    """y = x @ w.T + b   (nn.Linear forward semantics).

    x: (..., K)  inputs
    w: (N, K)    PyTorch nn.Linear weight layout (out_dim, in_dim), used as-is
    b: (N,)      bias
    compute_dtype=None keeps the caller's precision (exact nn.Linear numerics);
    pass jnp.bfloat16 to opt into faster low-precision MXU streaming
    (f32 accumulation, f32 bias add).
    """
    lead_shape = x.shape[:-1]
    K = x.shape[-1]
    N, K2 = w.shape
    assert K == K2, "input_dim mismatch"
    out_dtype = x.dtype
    cd = jnp.dtype(compute_dtype) if compute_dtype is not None else jnp.dtype(x.dtype)

    x2 = x.reshape(-1, K)
    M = x2.shape[0]

    # Lane-dense output: pad out_dim to a multiple of 128 (unmasked vst), and
    # pad the weight rows / bias with zeros; slice the padding off at the end.
    N_pad = max(_LANE, _round_up(N, _LANE))
    w_p = w
    b_f32 = b.astype(jnp.float32)
    if N_pad != N:
        w_p = jnp.pad(w_p, ((0, N_pad - N), (0, 0)))
        b_f32 = jnp.pad(b_f32, (0, N_pad - N))
    b_row = b_f32.reshape(1, N_pad)

    # Very large, lane-unaligned input_dim: zero-pad K once so it can be
    # streamed in 128-multiples (zeros contribute nothing to the dot).
    # TODO(synk): this is an extra wrapper-side pass over x; only taken for
    # large unaligned input_dim.
    if K % _LANE != 0 and K > 4096:
        pad_k = (-K) % _LANE
        x2 = jnp.pad(x2, ((0, 0), (0, pad_k)))
        w_p = jnp.pad(w_p, ((0, 0), (0, pad_k)))
        K = K + pad_k

    x_bytes = x2.dtype.itemsize
    w_bytes = w_p.dtype.itemsize
    out_bytes = jnp.dtype(out_dtype).itemsize
    budget, vmem_limit = _vmem_limits()
    plan = _make_plan(M, K, N_pad, x_bytes, w_bytes, out_bytes, block_m, budget)

    cost = pl.CostEstimate(
        flops=2 * M * K * N_pad,
        transcendentals=0,
        bytes_accessed=(M * K * x_bytes + N_pad * K * w_bytes
                        + N_pad * 4 + M * N_pad * out_bytes),
    )

    tm, tk = plan["tm"], plan["tk"]
    if plan["variant"] == "resident":
        if plan["k_steps"] == 1:
            kernel = functools.partial(_resident_single_kernel, compute_dtype=cd)
            grid = (pl.cdiv(M, tm),)
            in_specs = [
                pl.BlockSpec((tm, K), lambda i: (i, 0)),        # x tile
                pl.BlockSpec((N_pad, K), lambda i: (0, 0)),     # W: resident
                pl.BlockSpec((1, N_pad), lambda i: (0, 0)),     # bias
            ]
            out_specs = pl.BlockSpec((tm, N_pad), lambda i: (i, 0))
            scratch = []
            dims = ("parallel",)
        else:
            kernel = functools.partial(_resident_multi_kernel, tk=tk,
                                       compute_dtype=cd)
            grid = (pl.cdiv(M, tm), plan["k_steps"])
            in_specs = [
                pl.BlockSpec((tm, tk), lambda i, k: (i, k)),    # x tile streams
                pl.BlockSpec((N_pad, K), lambda i, k: (0, 0)),  # W: resident
                pl.BlockSpec((1, N_pad), lambda i, k: (0, 0)),  # bias
            ]
            out_specs = pl.BlockSpec((tm, N_pad), lambda i, k: (i, 0))
            scratch = [pltpu.VMEM((tm, N_pad), jnp.float32)]
            dims = ("parallel", "arbitrary")
    else:
        tn = plan["tn"]
        kernel = functools.partial(_streamed_kernel, compute_dtype=cd)
        grid = (pl.cdiv(M, tm), plan["n_steps"], plan["k_steps"])
        in_specs = [
            pl.BlockSpec((tm, tk), lambda i, n, k: (i, k)),
            pl.BlockSpec((tn, tk), lambda i, n, k: (n, k)),
            pl.BlockSpec((1, tn), lambda i, n, k: (0, n)),
        ]
        out_specs = pl.BlockSpec((tm, tn), lambda i, n, k: (i, n))
        scratch = [pltpu.VMEM((tm, tn), jnp.float32)]
        dims = ("parallel", "parallel", "arbitrary")

    out_padded = pl.pallas_call(
        kernel,
        out_shape=jax.ShapeDtypeStruct((M, N_pad), out_dtype),
        grid_spec=pltpu.PrefetchScalarGridSpec(
            num_scalar_prefetch=0,
            grid=grid,
            in_specs=in_specs,
            out_specs=out_specs,
            scratch_shapes=scratch,
        ),
        compiler_params=pltpu.CompilerParams(
            dimension_semantics=dims,
            vmem_limit_bytes=vmem_limit,
        ),
        cost_estimate=cost,
    )(x2, w_p, b_row)

    out = out_padded[:, :N] if N_pad != N else out_padded
    return out.reshape(*lead_shape, N)


# ---------------------------------------------------------------------------
# Self-test
# ---------------------------------------------------------------------------
if __name__ == "__main__":
    # Small deterministic example consistent with the module:
    #   input_dim = 32, output_dim = 16, batch = 8
    batch, input_dim, output_dim = 8, 32, 16

    key = jax.random.PRNGKey(0)
    kx, kw, kb = jax.random.split(key, 3)

    x = jax.random.normal(kx, (batch, input_dim), dtype=jnp.float32)

    # Deterministic nn.Linear-style init: U(-1/sqrt(in), 1/sqrt(in))
    bound = 1.0 / jnp.sqrt(jnp.float32(input_dim))
    w = jax.random.uniform(kw, (output_dim, input_dim),
                           minval=-bound, maxval=bound, dtype=jnp.float32)
    b = jax.random.uniform(kb, (output_dim,),
                           minval=-bound, maxval=bound, dtype=jnp.float32)

    y_ref = x @ w.T + b

    # Default path: native f32 streamed, cast (no-op) happens in-kernel.
    y = jax.block_until_ready(logistic_regression_forward(x, w, b))
    assert y.shape == (batch, output_dim)
    assert jnp.allclose(y, y_ref, atol=1e-5, rtol=1e-5), "f32 mismatch"

    # Opt-in bf16 fast path (bf16 MXU streaming, f32 accumulation): loose check.
    y_bf16 = jax.block_until_ready(
        logistic_regression_forward(x, w, b, compute_dtype=jnp.bfloat16))
    assert y_bf16.shape == (batch, output_dim)
    assert jnp.allclose(y_bf16, y_ref, atol=5e-2, rtol=5e-2), "bf16 mismatch"

    # Slightly larger shape: exercises the >=2 M-tile (megacore) split and the
    # resident-W single-K-step path with an unaligned output_dim.
    batch2, in2, out2 = 64, 384, 10
    kx2, kw2, kb2 = jax.random.split(jax.random.PRNGKey(1), 3)
    x_big = jax.random.normal(kx2, (batch2, in2), dtype=jnp.float32)
    bound2 = 1.0 / jnp.sqrt(jnp.float32(in2))
    w_big = jax.random.uniform(kw2, (out2, in2),
                               minval=-bound2, maxval=bound2, dtype=jnp.float32)
    b_big = jax.random.uniform(kb2, (out2,),
                               minval=-bound2, maxval=bound2, dtype=jnp.float32)
    y_big = jax.block_until_ready(
        logistic_regression_forward(x_big, w_big, b_big))
    y_big_ref = x_big @ w_big.T + b_big
    assert y_big.shape == (batch2, out2)
    assert jnp.allclose(y_big, y_big_ref, atol=2e-2, rtol=2e-2), "big mismatch"

    print("KERNEL_OK")
</pallas_src>

<mosaic_0001>
module attributes {stable_mosaic.version = 11 : i64} {
  func.func @_resident_single_kernel(%arg0: i32, %arg1: memref<8x32xf32, #tpu.memory_space<vmem>>, %arg2: memref<128x32xf32, #tpu.memory_space<vmem>>, %arg3: memref<1x128xf32, #tpu.memory_space<vmem>>, %arg4: memref<8x128xf32, #tpu.memory_space<vmem>>) attributes {dimension_semantics = [#tpu.dimension_semantics<parallel>], iteration_bounds = array<i64: 1>, scalar_prefetch = 0 : i64, scratch_operands = 0 : i64, tpu.core_type = #tpu.core_type<tc>, window_params = [{transform_indices = @transform_0, window_bounds = array<i64: 8, 32>}, {pipeline_mode = #tpu.pipeline_mode<synchronous>, transform_indices = @transform_1, window_bounds = array<i64: 128, 32>}, {pipeline_mode = #tpu.pipeline_mode<synchronous>, transform_indices = @transform_2, window_bounds = array<i64: 1, 128>}, {transform_indices = @transform_3, window_bounds = array<i64: 8, 128>}]} {
    %c0 = arith.constant 0 : index
    %c0_0 = arith.constant 0 : index
    %0 = vector.load %arg1[%c0, %c0_0] : memref<8x32xf32, #tpu.memory_space<vmem>>, vector<8x32xf32>
    %c0_1 = arith.constant 0 : index
    %c0_2 = arith.constant 0 : index
    %1 = vector.load %arg2[%c0_1, %c0_2] : memref<128x32xf32, #tpu.memory_space<vmem>>, vector<128x32xf32>
    %cst = arith.constant dense<0.000000e+00> : vector<8x128xf32>
    %2 = tpu.matmul %0, %1, %cst {dimension_numbers = #tpu.dot_dimension_numbers<[1], [1], [0], [0], [0, 0, 1, 0], [], []>} : vector<8x32xf32>, vector<128x32xf32>, vector<8x128xf32> -> vector<8x128xf32>
    %c0_3 = arith.constant 0 : index
    %c0_4 = arith.constant 0 : index
    %3 = vector.load %arg3[%c0_3, %c0_4] : memref<1x128xf32, #tpu.memory_space<vmem>>, vector<1x128xf32>
    %4 = vector.broadcast %3 : vector<1x128xf32> to vector<8x128xf32>
    %5 = arith.addf %2, %4 : vector<8x128xf32>
    %c0_5 = arith.constant 0 : index
    %c0_6 = arith.constant 0 : index
    %6 = vector.load %arg4[%c0_5, %c0_6] : memref<8x128xf32, #tpu.memory_space<vmem>>, vector<8x128xf32>
    tpu.vector_store %arg4[%c0_5, %c0_6], %5 {strides = array<i32>} : memref<8x128xf32, #tpu.memory_space<vmem>>, vector<8x128xf32>,
    return
  }
  func.func @transform_0(%arg0: i32) -> (i32, i32) {
    %c0_i32 = arith.constant 0 : i32
    %c0_i32_0 = arith.constant 0 : i32
    return %arg0, %c0_i32 : i32, i32
  }
  func.func @transform_1(%arg0: i32) -> (i32, i32) {
    %c0_i32 = arith.constant 0 : i32
    %c0_i32_0 = arith.constant 0 : i32
    %c0_i32_1 = arith.constant 0 : i32
    return %c0_i32, %c0_i32_0 : i32, i32
  }
  func.func @transform_2(%arg0: i32) -> (i32, i32) {
    %c0_i32 = arith.constant 0 : i32
    %c0_i32_0 = arith.constant 0 : i32
    %c0_i32_1 = arith.constant 0 : i32
    return %c0_i32, %c0_i32_0 : i32, i32
  }
  func.func @transform_3(%arg0: i32) -> (i32, i32) {
    %c0_i32 = arith.constant 0 : i32
    %c0_i32_0 = arith.constant 0 : i32
    return %arg0, %c0_i32 : i32, i32
  }
}

</mosaic_0001>

<llo_original>
// kernel: logistic_regression_forward.1
$region0: #{logistic_regression_forward.1}
  #allocation0 [shape = 'u32[]', space=smem, size = 0x4, offset = 0x4, fixed_abs, tag = 'smem constant byte address 0x4 - core index']
  #allocation1 [shape = 'u32[72,128]{1,0:T(1,128)}', space=vmem, size = 0x9000, scoped, tag = 'internal scratch']
  %s0 = inlined_call_operand.vmem [shape: f32[8,32], index: 0, kind: input, shape index: {}]
  %s1 = inlined_call_operand.vmem [shape: f32[128,32], index: 1, kind: input, shape index: {}]
  %s2 = inlined_call_operand.vmem [shape: f32[1,128], index: 2, kind: input, shape index: {}]
  %s3 = inlined_call_operand.hbm [shape: f32[8,128], index: 3, kind: output, shape index: {}]
  %s4 = sld [smem:[#allocation0]]
  $region22: #{logistic_regression_forward.1} parent=0
    _
  %s6 = ssub.s32 1, %s4
  %s7 = scalar_select 0, %s6, %s4
  $region1: #{logistic_regression_forward.1} parent=0
    #allocation2 [shape = 'u8[4096]{0}', space=vmem, size = 0x1000, scoped, tag = 'output window, operand 0, single buffered']
    #allocation3 [shape = 's32[1]{0}', space=sflag, size = 0x4, scoped, tag = 'scoped memory for logistic_regression_forward.1']
    %8 = vsyncpa [#allocation3], 0
    // Predicated region
    $region2: #{logistic_regression_forward.1} parent=1 // pred_check
      _
    $region3: #{logistic_regression_forward.1} parent=1 // pred_check_branch
      %10 = sbr.rel (0) target = $region5
    $region4: #{logistic_regression_forward.1} parent=1 // pred_region
      _
    $region5: #{logistic_regression_forward.1} parent=1 // pred_fallthru
      _
    // Predicated region
    $region6: #{logistic_regression_forward.1} parent=1 // pred_check
      _
    $region7: #{logistic_regression_forward.1} parent=1 // pred_check_branch
      %12 = sbr.rel (0) target = $region9
    $region8: #{logistic_regression_forward.1} parent=1 // pred_region
      _
    $region9: #{logistic_regression_forward.1} parent=1 // pred_fallthru
      _
    // Predicated region
    $region10: #{logistic_regression_forward.1} parent=1 // pred_check
      _
    $region11: #{logistic_regression_forward.1} parent=1 // pred_check_branch
      %14 = sbr.rel (0) target = $region13
    $region12: #{logistic_regression_forward.1} parent=1 // pred_region
      _
    $region13: #{logistic_regression_forward.1} parent=1 // pred_fallthru
      _
    %v15 = vld [vmem:[%s0] sm:$0xff]
    %v16 = vld [vmem:[%s1] sm:$0xff]
    %v17 = vld [vmem:[%s1 + $0x8] sm:$0xff]
    %v18 = vld [vmem:[%s1 + $0x10] sm:$0xff]
    %v19 = vld [vmem:[%s1 + $0x18] sm:$0xff]
    %v20 = vld [vmem:[%s1 + $0x20] sm:$0xff]
    %v21 = vld [vmem:[%s1 + $0x28] sm:$0xff]
    %v22 = vld [vmem:[%s1 + $0x30] sm:$0xff]
    %v23 = vld [vmem:[%s1 + $0x38] sm:$0xff]
    %v24 = vld [vmem:[%s1 + $0x40] sm:$0xff]
    %v25 = vld [vmem:[%s1 + $0x48] sm:$0xff]
    %v26 = vld [vmem:[%s1 + $0x50] sm:$0xff]
    %v27 = vld [vmem:[%s1 + $0x58] sm:$0xff]
    %v28 = vld [vmem:[%s1 + $0x60] sm:$0xff]
    %v29 = vld [vmem:[%s1 + $0x68] sm:$0xff]
    %v30 = vld [vmem:[%s1 + $0x70] sm:$0xff]
    %v31 = vld [vmem:[%s1 + $0x78] sm:$0xff]
    %v32 = vld [vmem:[%s2] sm:$0x1]
    %v34 = vperm.slane %v32, 0
    %vm36 = vcmask 261120
    %v38 = vsel %vm36, %v15, 0
    %v41 = vsel %vm36, %v16, 0
    %v44 = vsel %vm36, %v17, 0
    %v47 = vsel %vm36, %v18, 0
    %v50 = vsel %vm36, %v19, 0
    %v53 = vsel %vm36, %v20, 0
    %v56 = vsel %vm36, %v21, 0
    %v59 = vsel %vm36, %v22, 0
    %v62 = vsel %vm36, %v23, 0
    %v65 = vsel %vm36, %v24, 0
    %v68 = vsel %vm36, %v25, 0
    %v71 = vsel %vm36, %v26, 0
    %v74 = vsel %vm36, %v27, 0
    %v77 = vsel %vm36, %v28, 0
    %v80 = vsel %vm36, %v29, 0
    %v83 = vsel %vm36, %v30, 0
    %v86 = vsel %vm36, %v31, 0
    %88 = vmatpush.xpose.msra.mxu0 %v86
    %89 = vmatpush.xpose.msra.mxu0 %v83
    %90 = vmatpush.xpose.msra.mxu0 %v80
    %91 = vmatpush.xpose.msra.mxu0 %v77
    %92 = vmatpush.xpose.msra.mxu0 %v74
    %93 = vmatpush.xpose.msra.mxu0 %v71
    %94 = vmatpush.xpose.msra.mxu0 %v68
    %95 = vmatpush.xpose.msra.mxu0 %v65
    %96 = vmatpush.xpose.msra.mxu0 %v62
    %97 = vmatpush.xpose.msra.mxu0 %v59
    %98 = vmatpush.xpose.msra.mxu0 %v56
    %99 = vmatpush.xpose.msra.mxu0 %v53
    %100 = vmatpush.xpose.msra.mxu0 %v50
    %101 = vmatpush.xpose.msra.mxu0 %v47
    %102 = vmatpush.xpose.msra.mxu0 %v44
    %103 = vmatpush.xpose.msra.mxu0 %v41
    %104 = vmatmul.f32.gmra.mxu0 %v38
    %v105 = vpop.f32.mrf.mxu0
    %v106 = vadd.f32 %v34, %v105
    %107 = vdwg.mxu0
    %108 = vst [vmem:[#allocation2] sm:$0xff] %v106
    // Predicated region
    $region14: #{logistic_regression_forward.1} parent=1 // pred_check
      _
    $region15: #{logistic_regression_forward.1} parent=1 // pred_check_branch
      %110 = sbr.rel (0) target = $region17
    $region16: #{logistic_regression_forward.1} parent=1 // pred_region
      %112 = vsyncadd [#allocation3], 0
      %s114 = sshll.u32 [#allocation2], 4
      %s115 = int_to_ptr.vmem [resolvable:$true] %s114
      %s116 = sshll.u32 %s3, 4
      %s117 = int_to_ptr.hbm [resolvable:$true] %s116
      %119 = dma.vmem_to_hbm [thread:$0]  %s115, 128, %s117, [#allocation3]
    $region17: #{logistic_regression_forward.1} parent=1 // pred_fallthru
      _
    // Predicated region
    $region18: #{logistic_regression_forward.1} parent=1 // pred_check
      _
    $region19: #{logistic_regression_forward.1} parent=1 // pred_check_branch
      %121 = sbr.rel (0) target = $region21
    $region20: #{logistic_regression_forward.1} parent=1 // pred_region
      %123 = dma.done [#allocation3], 128
    $region21: #{logistic_regression_forward.1} parent=1 // pred_fallthru
      _
    %124 = vsyncpa [#allocation3], 1

</llo_original>
